<compile_context>
chip_gen: v7x
topology: tpu7x:2x2x1
jax: 0.10.0
libtpu: 0.0.40
codegen_flags: <defaults>
</compile_context>

<pallas_src>
import functools

import jax
import jax.numpy as jnp
from jax import lax
from jax.experimental import pallas as pl
from jax.experimental.pallas import tpu as pltpu


def _cdiv(a, b):
    return -(-a // b)


def _round_up(a, m):
    return _cdiv(a, m) * m


def _dw_kernel(coef_ref, x_ref, o_ref, *, H, W, K, pad, rows_per_chunk,
               act, activation):
    """coef_ref : VMEM (K*K + 1, H*W) f32 — per-tap coefficient maps + bias row.
    x_ref    : VMEM (TN, H*W)          — TN independent images, H*W on lanes.
    o_ref    : VMEM (TN, H*W)
    """
    HW = H * W
    TN = x_ref.shape[0]
    R = rows_per_chunk

    # Static flat offsets of the K*K taps: off = dyo*W + dxo, dyo/dxo in [-pad, pad].
    offs = [(dyi - pad) * W + (dxi - pad) for dyi in range(K) for dxi in range(K)]

    def chunk(ci, carry):
        s = pl.multiple_of(ci * R, R)
        xs = x_ref[pl.ds(s, R), :].astype(jnp.float32)          # (R, HW)

        terms = []
        for t, off in enumerate(offs):
            sh = (-off) % HW
            tap = xs if sh == 0 else pltpu.roll(xs, sh, axis=1)  # XLU lane roll
            # (1, HW) coefficient row broadcasts along sublanes; border taps
            # are already zeroed inside the coefficient map (zero padding).
            terms.append(tap * coef_ref[t:t + 1, :])

        # Balanced tree-sum: shorter dependence chain than a serial accumulate.
        while len(terms) > 1:
            nxt = [terms[i] + terms[i + 1] for i in range(0, len(terms) - 1, 2)]
            if len(terms) % 2:
                nxt.append(terms[-1])
            terms = nxt
        acc = terms[0] + coef_ref[K * K:K * K + 1, :]             # + bias row

        if act:
            if activation == "relu":
                acc = jnp.maximum(acc, 0.0)
            elif activation == "lrelu":
                acc = jnp.where(acc >= 0.0, acc, 0.01 * acc)
            elif activation == "tanh":
                acc = jnp.tanh(acc)

        o_ref[pl.ds(s, R), :] = acc.astype(o_ref.dtype)
        return carry

    lax.fori_loop(0, TN // R, chunk, 0)


def depthwise_block_forward(x, weight, bias, act=True, activation="relu",
                            block_n=None):
    """x: (B, C, H, W); weight: (1, 1, K, K); bias: (1,).

    Matches PyTorch depthwise_block.forward: the shared single-channel conv is
    applied to every channel, + bias, + activation (if act=True)."""
    if act and activation not in ("relu", "lrelu", "tanh"):
        raise ValueError(f"unsupported activation: {activation!r}")

    B, C, H, W = x.shape
    K = weight.shape[-1]
    pad = K // 2
    N, HW = B * C, H * W

    # Zero-copy relayout: (B, C, H, W) -> (N, H*W); no HBM transpose pass.
    xr = x.reshape(N, HW)

    # Inner row chunk: keep each (R, HW) f32 value at ~<=32 KiB so the handful
    # of live values per tap-sum fit the 64x4KiB vector register file.
    R = max(8, (8192 // max(HW, 1)) // 8 * 8)
    R = min(R, _round_up(N, 8))
    # TODO(synk): for very large H*W (e.g. >=256x256) add spatial (lane-axis)
    # tiling with a halo; a single 8-row chunk no longer fits registers there.

    if block_n is None:
        max_elems = (8 << 20) // 4                       # ~8 MiB f32 per block
        tn_budget = max(R, (max_elems // max(HW, 1)) // R * R)
        tn_quarter = max(R, _round_up(_cdiv(N, 4), R))   # keep >= ~4 grid steps
        block_n = min(tn_budget, tn_quarter)
    TN = max(R, _round_up(block_n, R))
    TN = min(TN, _round_up(N, R))

    # Per-tap coefficient maps: weight[tap] on the tap's in-bounds footprint,
    # 0 where the tap would read into the zero padding; last row is the bias.
    # Tiny ((K*K+1) * H*W f32, a few KiB) and computed once per call.
    wk = weight.reshape(K, K).astype(jnp.float32)
    h_idx = jnp.arange(H, dtype=jnp.int32).reshape(H, 1)
    w_idx = jnp.arange(W, dtype=jnp.int32).reshape(1, W)
    rows = []
    for dyi in range(K):
        dyo = dyi - pad
        for dxi in range(K):
            dxo = dxi - pad
            valid = ((h_idx + dyo >= 0) & (h_idx + dyo < H) &
                     (w_idx + dxo >= 0) & (w_idx + dxo < W))
            rows.append(valid.astype(jnp.float32).reshape(HW) * wk[dyi, dxi])
    rows.append(jnp.broadcast_to(bias.astype(jnp.float32), (HW,)))
    coef = jnp.stack(rows, axis=0)                       # (K*K + 1, HW)

    kern = functools.partial(_dw_kernel, H=H, W=W, K=K, pad=pad,
                             rows_per_chunk=R, act=act, activation=activation)

    out = pl.pallas_call(
        kern,
        out_shape=jax.ShapeDtypeStruct((N, HW), x.dtype),
        grid=(pl.cdiv(N, TN),),
        in_specs=[
            pl.BlockSpec((K * K + 1, HW), lambda n: (0, 0)),   # coefficients
            pl.BlockSpec((TN, HW), lambda n: (n, 0)),          # images
        ],
        out_specs=pl.BlockSpec((TN, HW), lambda n: (n, 0)),
        compiler_params=pltpu.CompilerParams(
            dimension_semantics=("parallel",),
            vmem_limit_bytes=48 << 20),
    )(coef, xr)

    return out.reshape(B, C, H, W)                       # zero-copy view back


def _reference(x, weight, bias, act=True, activation="relu"):
    """Pure-JAX reference matching the PyTorch forward."""
    B, C, H, W = x.shape
    xr = x.reshape(B * C, 1, H, W)
    y = lax.conv_general_dilated(
        xr, weight, window_strides=(1, 1), padding=((1, 1), (1, 1)),
        dimension_numbers=("NCHW", "OIHW", "NCHW"))
    y = (y + bias.reshape(1, 1, 1, 1)).reshape(B, C, H, W)
    if act:
        if activation == "relu":
            y = jnp.maximum(y, 0.0)
        elif activation == "lrelu":
            y = jnp.where(y >= 0.0, y, 0.01 * y)
        elif activation == "tanh":
            y = jnp.tanh(y)
    return y


if __name__ == "__main__":
    key = jax.random.PRNGKey(0)
    kx, kw, kb = jax.random.split(key, 3)

    B, C, H, W = 2, 4, 16, 16
    K = 3

    x = jax.random.normal(kx, (B, C, H, W), dtype=jnp.float32)
    # synthetic nn.Conv2d(1, 1, 3) parameters: weight (1,1,3,3), bias (1,)
    weight = jax.random.normal(kw, (1, 1, K, K), dtype=jnp.float32) * 0.3
    bias = jax.random.normal(kb, (1,), dtype=jnp.float32) * 0.1

    fwd = jax.jit(lambda a, w, b: depthwise_block_forward(
        a, w, b, act=True, activation="relu"))
    out = jax.block_until_ready(fwd(x, weight, bias))

    ref = _reference(x, weight, bias, act=True, activation="relu")
    assert out.shape == (B, C, H, W)
    assert jnp.allclose(out, ref, atol=1e-5, rtol=1e-5), "mismatch vs reference"

    print("KERNEL_OK")
</pallas_src>

<mosaic_0001>
module attributes {stable_mosaic.version = 11 : i64} {
  func.func @_dw_kernel(%arg0: i32, %arg1: memref<10x256xf32, #tpu.memory_space<vmem>>, %arg2: memref<8x256xf32, #tpu.memory_space<vmem>>, %arg3: memref<8x256xf32, #tpu.memory_space<vmem>>) attributes {dimension_semantics = [#tpu.dimension_semantics<parallel>], iteration_bounds = array<i64: 1>, scalar_prefetch = 0 : i64, scratch_operands = 0 : i64, tpu.core_type = #tpu.core_type<tc>, window_params = [{pipeline_mode = #tpu.pipeline_mode<synchronous>, transform_indices = @transform_0, window_bounds = array<i64: 10, 256>}, {transform_indices = @transform_1, window_bounds = array<i64: 8, 256>}, {transform_indices = @transform_2, window_bounds = array<i64: 8, 256>}]} {
    %c0_i32 = arith.constant 0 : i32
    %c8_i32 = arith.constant 8 : i32
    %0 = arith.muli %c0_i32, %c8_i32 : i32
    %1 = tpu.assume_multiple %0, 8 : i32
    %2 = arith.index_cast %1 : i32 to index
    %c0 = arith.constant 0 : index
    %3 = vector.load %arg2[%2, %c0] : memref<8x256xf32, #tpu.memory_space<vmem>>, vector<8x256xf32>
    %c17_i32 = arith.constant 17 : i32
    %4 = tpu.dynamic_rotate %3 by %c17_i32 dim 1 : vector<8x256xf32>, i32 -> vector<8x256xf32>
    %c0_0 = arith.constant 0 : index
    %c0_1 = arith.constant 0 : index
    %5 = vector.load %arg1[%c0_0, %c0_1] : memref<10x256xf32, #tpu.memory_space<vmem>>, vector<1x256xf32>
    %6 = vector.broadcast %5 : vector<1x256xf32> to vector<8x256xf32>
    %7 = arith.mulf %4, %6 : vector<8x256xf32>
    %c16_i32 = arith.constant 16 : i32
    %8 = tpu.dynamic_rotate %3 by %c16_i32 dim 1 : vector<8x256xf32>, i32 -> vector<8x256xf32>
    %c1 = arith.constant 1 : index
    %c0_2 = arith.constant 0 : index
    %9 = vector.load %arg1[%c1, %c0_2] : memref<10x256xf32, #tpu.memory_space<vmem>>, vector<1x256xf32>
    %10 = vector.broadcast %9 : vector<1x256xf32> to vector<8x256xf32>
    %11 = arith.mulf %8, %10 : vector<8x256xf32>
    %c15_i32 = arith.constant 15 : i32
    %12 = tpu.dynamic_rotate %3 by %c15_i32 dim 1 : vector<8x256xf32>, i32 -> vector<8x256xf32>
    %c2 = arith.constant 2 : index
    %c0_3 = arith.constant 0 : index
    %13 = vector.load %arg1[%c2, %c0_3] : memref<10x256xf32, #tpu.memory_space<vmem>>, vector<1x256xf32>
    %14 = vector.broadcast %13 : vector<1x256xf32> to vector<8x256xf32>
    %15 = arith.mulf %12, %14 : vector<8x256xf32>
    %c1_i32 = arith.constant 1 : i32
    %16 = tpu.dynamic_rotate %3 by %c1_i32 dim 1 : vector<8x256xf32>, i32 -> vector<8x256xf32>
    %c3 = arith.constant 3 : index
    %c0_4 = arith.constant 0 : index
    %17 = vector.load %arg1[%c3, %c0_4] : memref<10x256xf32, #tpu.memory_space<vmem>>, vector<1x256xf32>
    %18 = vector.broadcast %17 : vector<1x256xf32> to vector<8x256xf32>
    %19 = arith.mulf %16, %18 : vector<8x256xf32>
    %c4 = arith.constant 4 : index
    %c0_5 = arith.constant 0 : index
    %20 = vector.load %arg1[%c4, %c0_5] : memref<10x256xf32, #tpu.memory_space<vmem>>, vector<1x256xf32>
    %21 = vector.broadcast %20 : vector<1x256xf32> to vector<8x256xf32>
    %22 = arith.mulf %3, %21 : vector<8x256xf32>
    %c255_i32 = arith.constant 255 : i32
    %23 = tpu.dynamic_rotate %3 by %c255_i32 dim 1 : vector<8x256xf32>, i32 -> vector<8x256xf32>
    %c5 = arith.constant 5 : index
    %c0_6 = arith.constant 0 : index
    %24 = vector.load %arg1[%c5, %c0_6] : memref<10x256xf32, #tpu.memory_space<vmem>>, vector<1x256xf32>
    %25 = vector.broadcast %24 : vector<1x256xf32> to vector<8x256xf32>
    %26 = arith.mulf %23, %25 : vector<8x256xf32>
    %c241_i32 = arith.constant 241 : i32
    %27 = tpu.dynamic_rotate %3 by %c241_i32 dim 1 : vector<8x256xf32>, i32 -> vector<8x256xf32>
    %c6 = arith.constant 6 : index
    %c0_7 = arith.constant 0 : index
    %28 = vector.load %arg1[%c6, %c0_7] : memref<10x256xf32, #tpu.memory_space<vmem>>, vector<1x256xf32>
    %29 = vector.broadcast %28 : vector<1x256xf32> to vector<8x256xf32>
    %30 = arith.mulf %27, %29 : vector<8x256xf32>
    %c240_i32 = arith.constant 240 : i32
    %31 = tpu.dynamic_rotate %3 by %c240_i32 dim 1 : vector<8x256xf32>, i32 -> vector<8x256xf32>
    %c7 = arith.constant 7 : index
    %c0_8 = arith.constant 0 : index
    %32 = vector.load %arg1[%c7, %c0_8] : memref<10x256xf32, #tpu.memory_space<vmem>>, vector<1x256xf32>
    %33 = vector.broadcast %32 : vector<1x256xf32> to vector<8x256xf32>
    %34 = arith.mulf %31, %33 : vector<8x256xf32>
    %c239_i32 = arith.constant 239 : i32
    %35 = tpu.dynamic_rotate %3 by %c239_i32 dim 1 : vector<8x256xf32>, i32 -> vector<8x256xf32>
    %c8 = arith.constant 8 : index
    %c0_9 = arith.constant 0 : index
    %36 = vector.load %arg1[%c8, %c0_9] : memref<10x256xf32, #tpu.memory_space<vmem>>, vector<1x256xf32>
    %37 = vector.broadcast %36 : vector<1x256xf32> to vector<8x256xf32>
    %38 = arith.mulf %35, %37 : vector<8x256xf32>
    %39 = arith.addf %7, %11 : vector<8x256xf32>
    %40 = arith.addf %15, %19 : vector<8x256xf32>
    %41 = arith.addf %22, %26 : vector<8x256xf32>
    %42 = arith.addf %30, %34 : vector<8x256xf32>
    %43 = arith.addf %39, %40 : vector<8x256xf32>
    %44 = arith.addf %41, %42 : vector<8x256xf32>
    %45 = arith.addf %43, %44 : vector<8x256xf32>
    %46 = arith.addf %45, %38 : vector<8x256xf32>
    %c9 = arith.constant 9 : index
    %c0_10 = arith.constant 0 : index
    %47 = vector.load %arg1[%c9, %c0_10] : memref<10x256xf32, #tpu.memory_space<vmem>>, vector<1x256xf32>
    %48 = vector.broadcast %47 : vector<1x256xf32> to vector<8x256xf32>
    %49 = arith.addf %46, %48 : vector<8x256xf32>
    %cst = arith.constant 0.000000e+00 : f32
    %50 = vector.broadcast %cst : f32 to vector<8x256xf32>
    %51 = arith.maximumf %49, %50 : vector<8x256xf32>
    %52 = arith.index_cast %1 : i32 to index
    %c0_11 = arith.constant 0 : index
    %53 = vector.load %arg3[%52, %c0_11] : memref<8x256xf32, #tpu.memory_space<vmem>>, vector<8x256xf32>
    tpu.vector_store %arg3[%52, %c0_11], %51 {strides = array<i32>} : memref<8x256xf32, #tpu.memory_space<vmem>>, vector<8x256xf32>,
    %c1_i32_12 = arith.constant 1 : i32
    return
  }
  func.func @transform_0(%arg0: i32) -> (i32, i32) {
    %c0_i32 = arith.constant 0 : i32
    %c0_i32_0 = arith.constant 0 : i32
    %c0_i32_1 = arith.constant 0 : i32
    return %c0_i32, %c0_i32_0 : i32, i32
  }
  func.func @transform_1(%arg0: i32) -> (i32, i32) {
    %c0_i32 = arith.constant 0 : i32
    %c0_i32_0 = arith.constant 0 : i32
    return %arg0, %c0_i32 : i32, i32
  }
  func.func @transform_2(%arg0: i32) -> (i32, i32) {
    %c0_i32 = arith.constant 0 : i32
    %c0_i32_0 = arith.constant 0 : i32
    return %arg0, %c0_i32 : i32, i32
  }
}

</mosaic_0001>

<llo_original>
// kernel: _lambda_.1
$region0: #{_lambda_.1}
  #allocation0 [shape = 'u32[]', space=smem, size = 0x4, offset = 0x4, fixed_abs, tag = 'smem constant byte address 0x4 - core index']
  #allocation1 [shape = 'u32[144,128]{1,0:T(1,128)}', space=vmem, size = 0x12000, scoped, tag = 'internal scratch']
  %s0 = inlined_call_operand.vmem [shape: f32[10,256], index: 0, kind: input, shape index: {}]
  %s1 = inlined_call_operand.vmem [shape: f32[8,256], index: 1, kind: input, shape index: {}]
  %s2 = inlined_call_operand.vmem [shape: f32[8,256], index: 2, kind: output, shape index: {}]
  %s3 = sld [smem:[#allocation0]]
  $region18: #{_lambda_.1} parent=0
    _
  %s5 = ssub.s32 1, %s3
  %s6 = scalar_select 0, %s5, %s3
  // Predicated region
  $region2: #{_lambda_.1} parent=0 // pred_check
    _
  $region3: #{_lambda_.1} parent=0 // pred_check_branch
    %8 = sbr.rel (0) target = $region5
  $region4: #{_lambda_.1} parent=0 // pred_region
    _
  $region5: #{_lambda_.1} parent=0 // pred_fallthru
    _
  // Predicated region
  $region6: #{_lambda_.1} parent=0 // pred_check
    _
  $region7: #{_lambda_.1} parent=0 // pred_check_branch
    %10 = sbr.rel (0) target = $region9
  $region8: #{_lambda_.1} parent=0 // pred_region
    _
  $region9: #{_lambda_.1} parent=0 // pred_fallthru
    _
  %s11 = smul.u32 0, 2
  %s12 = smul.addr %s11, 8
  %s13 = scalar_lea.vmem %s1, %s12
  %v14 = vld [vmem:[%s13] sm:$0xff]
  %v15 = vld [vmem:[%s13 + $0x8] sm:$0xff]
  %16 = vrot.lane.b32.xlu0 %v14, 17
  %v17 = vpop.permute.xlu0 %16
  %18 = vrot.lane.b32.xlu0 %v15, 17
  %v19 = vpop.permute.xlu0 %18
  %v20 = vlaneseq
  %v21 = vand.u32 %v20, 127
  %vm22 = vcmp.lt.s32.totalorder %v21, 17
  %v23 = vsel %vm22, %v17, %v19
  %v24 = vsel %vm22, %v19, %v17
  %v25 = vld [vmem:[%s0] ss:$8 sm:$0x3]
  %v27 = vlaneseq
  %v28 = vshrl.u32 %v27, 7
  %v29 = vsub.s32 0, %v28
  %v30 = vrot.slane %v25, %v29
  %v31 = vlaneseq
  %v32 = vshrl.u32 %v31, 7
  %v33 = vsub.s32 1, %v32
  %v34 = vrot.slane %v25, %v33
  %v37 = vmul.f32 %v24, %v30
  %v38 = vmul.f32 %v23, %v34
  %39 = vrot.lane.b32.xlu0 %v14, 16
  %v40 = vpop.permute.xlu0 %39
  %41 = vrot.lane.b32.xlu0 %v15, 16
  %v42 = vpop.permute.xlu0 %41
  %vm43 = vcmp.lt.s32.totalorder %v21, 16
  %v44 = vsel %vm43, %v40, %v42
  %v45 = vsel %vm43, %v42, %v40
  %s46 = scalar_lea.vmem %s0, 1
  %v47 = vld [vmem:[%s46] ss:$8 sm:$0x3]
  %v49 = vlaneseq
  %v50 = vshrl.u32 %v49, 7
  %v51 = vsub.s32 0, %v50
  %v52 = vrot.slane %v47, %v51
  %v53 = vlaneseq
  %v54 = vshrl.u32 %v53, 7
  %v55 = vsub.s32 1, %v54
  %v56 = vrot.slane %v47, %v55
  %v59 = vmul.f32 %v45, %v52
  %v60 = vmul.f32 %v44, %v56
  %61 = vrot.lane.b32.xlu0 %v14, 15
  %v62 = vpop.permute.xlu0 %61
  %63 = vrot.lane.b32.xlu0 %v15, 15
  %v64 = vpop.permute.xlu0 %63
  %vm65 = vcmp.lt.s32.totalorder %v21, 15
  %v66 = vsel %vm65, %v62, %v64
  %v67 = vsel %vm65, %v64, %v62
  %s68 = scalar_lea.vmem %s0, 2
  %v69 = vld [vmem:[%s68] ss:$8 sm:$0x3]
  %v71 = vlaneseq
  %v72 = vshrl.u32 %v71, 7
  %v73 = vsub.s32 0, %v72
  %v74 = vrot.slane %v69, %v73
  %v75 = vlaneseq
  %v76 = vshrl.u32 %v75, 7
  %v77 = vsub.s32 1, %v76
  %v78 = vrot.slane %v69, %v77
  %v81 = vmul.f32 %v67, %v74
  %v82 = vmul.f32 %v66, %v78
  %83 = vrot.lane.b32.xlu0 %v14, 1
  %v84 = vpop.permute.xlu0 %83
  %85 = vrot.lane.b32.xlu0 %v15, 1
  %v86 = vpop.permute.xlu0 %85
  %vm87 = vcmp.lt.s32.totalorder %v21, 1
  %v88 = vsel %vm87, %v84, %v86
  %v89 = vsel %vm87, %v86, %v84
  %s90 = scalar_lea.vmem %s0, 3
  %v91 = vld [vmem:[%s90] ss:$8 sm:$0x3]
  %v93 = vlaneseq
  %v94 = vshrl.u32 %v93, 7
  %v95 = vsub.s32 0, %v94
  %v96 = vrot.slane %v91, %v95
  %v97 = vlaneseq
  %v98 = vshrl.u32 %v97, 7
  %v99 = vsub.s32 1, %v98
  %v100 = vrot.slane %v91, %v99
  %v103 = vmul.f32 %v89, %v96
  %v104 = vmul.f32 %v88, %v100
  %s105 = scalar_lea.vmem %s0, 4
  %v106 = vld [vmem:[%s105] ss:$8 sm:$0x3]
  %v108 = vlaneseq
  %v109 = vshrl.u32 %v108, 7
  %v110 = vsub.s32 0, %v109
  %v111 = vrot.slane %v106, %v110
  %v112 = vlaneseq
  %v113 = vshrl.u32 %v112, 7
  %v114 = vsub.s32 1, %v113
  %v115 = vrot.slane %v106, %v114
  %v118 = vmul.f32 %v14, %v111
  %v119 = vmul.f32 %v15, %v115
  %120 = vrot.lane.b32.xlu0 %v14, 127
  %v121 = vpop.permute.xlu0 %120
  %122 = vrot.lane.b32.xlu0 %v15, 127
  %v123 = vpop.permute.xlu0 %122
  %vm124 = vcmp.lt.s32.totalorder %v21, 127
  %v125 = vsel %vm124, %v121, %v123
  %v126 = vsel %vm124, %v123, %v121
  %s127 = scalar_lea.vmem %s0, 5
  %v128 = vld [vmem:[%s127] ss:$8 sm:$0x3]
  %v130 = vlaneseq
  %v131 = vshrl.u32 %v130, 7
  %v132 = vsub.s32 0, %v131
  %v133 = vrot.slane %v128, %v132
  %v134 = vlaneseq
  %v135 = vshrl.u32 %v134, 7
  %v136 = vsub.s32 1, %v135
  %v137 = vrot.slane %v128, %v136
  %v140 = vmul.f32 %v125, %v133
  %v141 = vmul.f32 %v126, %v137
  %142 = vrot.lane.b32.xlu0 %v14, 113
  %v143 = vpop.permute.xlu0 %142
  %144 = vrot.lane.b32.xlu0 %v15, 113
  %v145 = vpop.permute.xlu0 %144
  %vm146 = vcmp.lt.s32.totalorder %v21, 113
  %v147 = vsel %vm146, %v143, %v145
  %v148 = vsel %vm146, %v145, %v143
  %s149 = scalar_lea.vmem %s0, 6
  %v150 = vld [vmem:[%s149] ss:$8 sm:$0x3]
  %v152 = vlaneseq
  %v153 = vshrl.u32 %v152, 7
  %v154 = vsub.s32 0, %v153
  %v155 = vrot.slane %v150, %v154
  %v156 = vlaneseq
  %v157 = vshrl.u32 %v156, 7
  %v158 = vsub.s32 1, %v157
  %v159 = vrot.slane %v150, %v158
  %v162 = vmul.f32 %v147, %v155
  %v163 = vmul.f32 %v148, %v159
  %164 = vrot.lane.b32.xlu0 %v14, 112
  %v165 = vpop.permute.xlu0 %164
  %166 = vrot.lane.b32.xlu0 %v15, 112
  %v167 = vpop.permute.xlu0 %166
  %vm168 = vcmp.lt.s32.totalorder %v21, 112
  %v169 = vsel %vm168, %v165, %v167
  %v170 = vsel %vm168, %v167, %v165
  %s171 = scalar_lea.vmem %s0, 7
  %v172 = vld [vmem:[%s171] ss:$8 sm:$0x3]
  %v174 = vlaneseq
  %v175 = vshrl.u32 %v174, 7
  %v176 = vsub.s32 0, %v175
  %v177 = vrot.slane %v172, %v176
  %v178 = vlaneseq
  %v179 = vshrl.u32 %v178, 7
  %v180 = vsub.s32 1, %v179
  %v181 = vrot.slane %v172, %v180
  %v184 = vmul.f32 %v169, %v177
  %v185 = vmul.f32 %v170, %v181
  %186 = vrot.lane.b32.xlu0 %v14, 111
  %v187 = vpop.permute.xlu0 %186
  %188 = vrot.lane.b32.xlu0 %v15, 111
  %v189 = vpop.permute.xlu0 %188
  %vm190 = vcmp.lt.s32.totalorder %v21, 111
  %v191 = vsel %vm190, %v187, %v189
  %v192 = vsel %vm190, %v189, %v187
  %s193 = scalar_lea.vmem %s0, 16
  %v194 = vld [vmem:[%s193] ss:$8 sm:$0x3]
  %v196 = vlaneseq
  %v197 = vshrl.u32 %v196, 7
  %v198 = vsub.s32 0, %v197
  %v199 = vrot.slane %v194, %v198
  %v200 = vlaneseq
  %v201 = vshrl.u32 %v200, 7
  %v202 = vsub.s32 1, %v201
  %v203 = vrot.slane %v194, %v202
  %v206 = vmul.f32 %v191, %v199
  %v207 = vmul.f32 %v192, %v203
  %v208 = vadd.f32 %v37, %v59
  %v209 = vadd.f32 %v38, %v60
  %v210 = vadd.f32 %v81, %v103
  %v211 = vadd.f32 %v82, %v104
  %v212 = vadd.f32 %v118, %v140
  %v213 = vadd.f32 %v119, %v141
  %v214 = vadd.f32 %v162, %v184
  %v215 = vadd.f32 %v163, %v185
  %v216 = vadd.f32 %v208, %v210
  %v217 = vadd.f32 %v209, %v211
  %v218 = vadd.f32 %v212, %v214
  %v219 = vadd.f32 %v213, %v215
  %v220 = vadd.f32 %v216, %v218
  %v221 = vadd.f32 %v217, %v219
  %v222 = vadd.f32 %v220, %v206
  %v223 = vadd.f32 %v221, %v207
  %s224 = scalar_lea.vmem %s0, 17
  %v225 = vld [vmem:[%s224] ss:$8 sm:$0x3]
  %v227 = vlaneseq
  %v228 = vshrl.u32 %v227, 7
  %v229 = vsub.s32 0, %v228
  %v230 = vrot.slane %v225, %v229
  %v231 = vlaneseq
  %v232 = vshrl.u32 %v231, 7
  %v233 = vsub.s32 1, %v232
  %v234 = vrot.slane %v225, %v233
  %v237 = vadd.f32 %v222, %v230
  %v238 = vadd.f32 %v223, %v234
  %v239 = vmax.f32 %v237, 0.0
  %v240 = vmax.f32 %v238, 0.0
  %s241 = smul.addr %s11, 8
  %s242 = scalar_lea.vmem %s2, %s241
  %243 = vst [vmem:[%s242] sm:$0xff] %v239
  %244 = vst [vmem:[%s242 + $0x8] sm:$0xff] %v240
  // Predicated region
  $region10: #{_lambda_.1} parent=0 // pred_check
    _
  $region11: #{_lambda_.1} parent=0 // pred_check_branch
    %246 = sbr.rel (0) target = $region13
  $region12: #{_lambda_.1} parent=0 // pred_region
    _
  $region13: #{_lambda_.1} parent=0 // pred_fallthru
    _
  // Predicated region
  $region14: #{_lambda_.1} parent=0 // pred_check
    _
  $region15: #{_lambda_.1} parent=0 // pred_check_branch
    %248 = sbr.rel (0) target = $region17
  $region16: #{_lambda_.1} parent=0 // pred_region
    _
  $region17: #{_lambda_.1} parent=0 // pred_fallthru
    _

</llo_original>
